<compile_context>
chip_gen: v7x
topology: tpu7x:2x2x1
jax: 0.10.0
libtpu: 0.0.40
codegen_flags: <defaults>
</compile_context>

<pallas_src>
import functools

import jax
import jax.numpy as jnp
from jax.experimental import pallas as pl
from jax.experimental.pallas import tpu as pltpu


# ---------------------------------------------------------------------------
# Hardware-generation defaults
# ---------------------------------------------------------------------------

def _tpu_generation():
    """Best-effort TPU generation from device_kind (5 = v5e, 6 = v6e, 7 = v7x)."""
    try:
        kind = jax.devices()[0].device_kind.lower()
    except Exception:
        return 6
    if "v7" in kind or "7x" in kind:
        return 7
    if "v6" in kind:
        return 6
    if "v5" in kind:
        return 5
    if "v4" in kind or "v3" in kind or "v2" in kind:
        return 4
    return 6


def _gen_defaults(gen):
    """(target output-block bytes, scoped-VMEM limit, upcast sub-f32 math to f32)."""
    if gen >= 7:
        # v7x: 64 MiB physical VMEM -> keep blocks and the scoped limit modest;
        # ~3.2 TB/s HBM still amortizes the ~0.35us/step overhead at ~6 MiB blocks.
        return 6 << 20, 48 << 20, False
    if gen == 6:
        # v6e: 128 MiB physical VMEM, native bf16 VALU -> big blocks, no upcast.
        return 8 << 20, 96 << 20, False
    if gen == 5:
        # v5e: ~4 MiB blocks are already near roofline at ~820 GB/s; no bf16 VALU.
        return 4 << 20, 96 << 20, True
    # Older / unknown chips: stay conservative and keep the compiler's VMEM default.
    return 2 << 20, None, True


# ---------------------------------------------------------------------------
# Tile choosers (layout-aware: dtype sublane tile, 128-lane padding, 2x buffering)
# ---------------------------------------------------------------------------

def _round_up(x, m):
    return -(-x // m) * m


def _sublane_tile(dtype):
    return max(8, 32 // max(1, jnp.dtype(dtype).itemsize))


def _tiles_outer(batch, nf, dtype, target_bytes, vmem_limit):
    """(tb, tr) for the (B, F+1, F) outer-product path."""
    ism = jnp.dtype(dtype).itemsize
    sub = _sublane_tile(dtype)
    row_bytes = _round_up(nf, 128) * ism            # lane-padded VMEM cost of one row
    limit = vmem_limit if vmem_limit else (16 << 20)
    # Double-buffered output block + f32 temp + inputs must fit the scoped limit.
    budget = max(sub * row_bytes, min(target_bytes, limit // 4))
    tr = (budget // row_bytes) // sub * sub
    tr = max(sub, min(tr, (nf // sub) * sub))       # tr <= F keeps logits row-blocks in range
    tb = max(1, min(budget // (tr * row_bytes), batch))
    n_bb = pl.cdiv(batch, tb)
    tb = pl.cdiv(batch, n_bb)                       # balance batch blocks
    return tb, tr


def _tiles_flat(batch, nf, dtype, target_bytes, vmem_limit, lane_block=2048):
    """(tb, td) for the flat, lane-dense (B, F*(F+1)) path."""
    ism = jnp.dtype(dtype).itemsize
    sub = _sublane_tile(dtype)
    d_out = nf * (nf + 1)
    td = d_out if d_out <= lane_block else lane_block        # full dim or k*128 lanes
    lane_bytes = _round_up(td, 128) * ism
    limit = vmem_limit if vmem_limit else (16 << 20)
    # Output double-buffer + the two f32 gather results + selection matrices.
    budget = max(lane_bytes, min(target_bytes, limit // 6))
    tb = budget // lane_bytes
    if tb >= batch or batch <= sub:
        tb = batch
    else:
        tb = max(sub, (tb // sub) * sub)
        n_bb = pl.cdiv(batch, tb)
        tb = min(_round_up(pl.cdiv(batch, n_bb), sub), (batch // sub) * sub)
    return tb, td


# ---------------------------------------------------------------------------
# Kernels
# ---------------------------------------------------------------------------

def _mxu_select(x, sel):
    """Gather columns of x (tb, F) through a 0/1 selection matrix sel (F, td) -> f32 (tb, td).

    Every column of sel has at most one 1, so each output element is a single x value
    transported through the MXU.  f32 inputs are split into 3 bf16 limbs so the
    transport is exact to ~1 ulp; bf16 inputs use a single native bf16 matmul.
    """
    if x.dtype == jnp.bfloat16:
        return jnp.dot(x, sel, preferred_element_type=jnp.float32)
    r = x.astype(jnp.float32)
    out = None
    for _ in range(3):
        limb = r.astype(jnp.bfloat16)
        part = jnp.dot(limb, sel, preferred_element_type=jnp.float32)
        out = part if out is None else out + part
        r = r - limb.astype(jnp.float32)
    return out


def _flat_kernel(x_ref, o_ref, *, nf, td):
    """Lane-dense flat path: o[b, k] = m[b, k // F] * x[b, k % F].

    x_ref: (tb, F) logits block (resident across the lane-block axis).
    o_ref: (tb, td) slab of the flat (B, F*(F+1)) output (td = k*128 or the full dim).
    Virtual row F is the multiply-by-1 raw-logits tail; lanes past F*(F+1) select
    nothing and are dropped by the boundary writeback.
    """
    x = x_ref[...]
    # Absolute flat index of every lane in this block, and the candidate outer index c,
    # both at (F, td) so every comparison is a plain full-shape VPU op (no int div/mod).
    k = pl.program_id(1) * td + jax.lax.broadcasted_iota(jnp.int32, (nf, td), 1)
    c = jax.lax.broadcasted_iota(jnp.int32, (nf, td), 0)
    lo = c * nf
    # One-hot over the outer index i = k // F (row c active on lanes where i == c).
    sel_i = jnp.logical_and(k >= lo, k < lo + nf).astype(jnp.bfloat16)
    # i itself (capped at F), then the inner index j = k - i*F and its one-hot.
    i_idx = jnp.sum((k >= lo + nf).astype(jnp.int32), axis=0, keepdims=True)   # (1, td)
    sel_j = (c == (k - i_idx * nf)).astype(jnp.bfloat16)
    m_vec = _mxu_select(x, sel_i) + (i_idx == nf).astype(jnp.float32)          # tail -> *1.0
    x_vec = _mxu_select(x, sel_j)
    o_ref[...] = (m_vec * x_vec).astype(o_ref.dtype)


def _outer_kernel(m_ref, x_ref, o_ref, *, nf, tr, upcast):
    """Outer-product path: o[b, r, :] = (r < F ? logits[b, r] : 1) * logits[b, :].

    m_ref: (tb, tr, 1) logits slice along the output-row axis (BlockSpec index is
           clamped; rows >= F are replaced with 1.0 below, which makes row F the
           concatenated raw-logits tail and neutralizes any stale padding rows).
    x_ref: (tb, 1, F) logits row, resident across the row-block axis.
    o_ref: (tb, tr, F) output block (F lane-dense when F % 128 == 0).
    """
    m = m_ref[...]
    x = x_ref[...]
    row = pl.program_id(1) * tr + jax.lax.broadcasted_iota(jnp.int32, (1, tr, 1), 1)
    m = jnp.where(row < nf, m, jnp.ones_like(m))
    if upcast:
        # v5e (and older) has no bf16 VALU: do the multiply in f32, cast at the store.
        m = m.astype(jnp.float32)
        x = x.astype(jnp.float32)
    o_ref[...] = (m * x).astype(o_ref.dtype)


# ---------------------------------------------------------------------------
# Wrapper
# ---------------------------------------------------------------------------

def quadratic_feature_map(logits, *, target_block_bytes=None, vmem_limit_bytes=None):
    """Pallas implementation of QuadraticFeatureMap.forward.

    logits: (B, F) float array.
    returns: (B, F*(F+1)) = [row-major outer product logits_i*logits_j, logits].
    """
    batch, nf = logits.shape
    dtype = logits.dtype
    ism = jnp.dtype(dtype).itemsize
    rows = nf + 1
    d_out = nf * rows

    gen = _tpu_generation()
    g_target, g_vmem, g_upcast = _gen_defaults(gen)
    target = int(target_block_bytes) if target_block_bytes else g_target
    vmem_limit = int(vmem_limit_bytes) if vmem_limit_bytes else g_vmem

    out_bytes = batch * d_out * ism
    in_bytes = batch * nf * ism
    cparams = pltpu.CompilerParams(
        # No reduction / accumulator: every block is independent, so both axes are
        # parallel (lets v7x's two TensorCores split either axis; neutral on 1-TC chips).
        dimension_semantics=("parallel", "parallel"),
        vmem_limit_bytes=vmem_limit,
    )

    # --- Path 1: small / lane-sparse F -> flat output in lane-dense slabs. ---------
    if nf % 128 != 0 and nf <= 100:
        tb, td = _tiles_flat(batch, nf, dtype, target, vmem_limit)
        n_dots = 2 if dtype == jnp.bfloat16 else 6      # selection matmuls (limbs) per block
        cost = pl.CostEstimate(
            flops=int(2 * n_dots * batch * d_out * nf + batch * d_out),
            transcendentals=0,
            bytes_accessed=int(out_bytes + in_bytes))
        return pl.pallas_call(
            functools.partial(_flat_kernel, nf=nf, td=td),
            out_shape=jax.ShapeDtypeStruct((batch, d_out), dtype),
            grid=(pl.cdiv(batch, tb), pl.cdiv(d_out, td)),
            in_specs=[
                # Logits block: constant index across the lane-block axis -> resident.
                pl.BlockSpec((tb, nf), lambda bb, db: (bb, 0)),
            ],
            out_specs=pl.BlockSpec((tb, td), lambda bb, db: (bb, db)),
            compiler_params=cparams,
            cost_estimate=cost,
        )(logits)

    # --- Path 2: F lane-dense (multiple of 128, or large) -> (B, F+1, F) view. -----
    tb, tr = _tiles_outer(batch, nf, dtype, target, vmem_limit)
    max_m_rb = pl.cdiv(nf, tr) - 1                      # last valid logits row-block
    upcast = bool(g_upcast and jnp.issubdtype(dtype, jnp.floating) and ism < 4)
    cost = pl.CostEstimate(flops=int(batch * d_out), transcendentals=0,
                           bytes_accessed=int(out_bytes + 2 * in_bytes))
    out3 = pl.pallas_call(
        functools.partial(_outer_kernel, nf=nf, tr=tr, upcast=upcast),
        out_shape=jax.ShapeDtypeStruct((batch, rows, nf), dtype),
        grid=(pl.cdiv(batch, tb), pl.cdiv(rows, tr)),
        in_specs=[
            # Multiplier rows: logits sliced along the output-row axis; the index is
            # clamped so the pure-tail row block never reads out of bounds (its values
            # are masked to 1.0 in the kernel anyway).
            pl.BlockSpec((tb, tr, 1),
                         lambda bb, rb: (bb, jnp.minimum(rb, max_m_rb), 0)),
            # Feature row: constant block index across rb -> fetched once per batch
            # block and kept resident.
            pl.BlockSpec((tb, 1, nf), lambda bb, rb: (bb, 0, 0)),
        ],
        out_specs=pl.BlockSpec((tb, tr, nf), lambda bb, rb: (bb, rb, 0)),
        compiler_params=cparams,
        cost_estimate=cost,
    )(logits[:, :, None], logits[:, None, :])
    # Free trailing-dims reshape: (B, F+1, F) -> (B, F*F + F), i.e. exactly
    # torch.cat([quad.reshape(B, -1), logits], dim=-1).
    return out3.reshape(batch, d_out)


# ---------------------------------------------------------------------------
# Reference + self-test
# ---------------------------------------------------------------------------

def _reference(logits):
    quad = logits[:, :, None] * logits[:, None, :]
    return jnp.concatenate([quad.reshape(logits.shape[0], -1), logits], axis=-1)


if __name__ == "__main__":
    k0, k1, k2 = jax.random.split(jax.random.PRNGKey(0), 3)

    # Small shape consistent with the module: batch=2, num_features=4 -> out dim 20.
    # (F % 128 != 0 -> lane-dense flat path, single block.)
    b, f = 2, 4
    x = jax.random.normal(k0, (b, f), dtype=jnp.float32)
    out = jax.block_until_ready(quadratic_feature_map(x))
    ref = _reference(x)
    assert out.shape == (b, f * (f + 1)), out.shape
    assert jnp.allclose(out, ref, atol=1e-5, rtol=1e-5), "small-shape mismatch"

    # Flat path with a tiled lane axis (F*(F+1) = 5256 > one 2048-lane block).
    b, f = 16, 72
    x = jax.random.normal(k1, (b, f), dtype=jnp.float32)
    out = jax.block_until_ready(quadratic_feature_map(x))
    ref = _reference(x)
    assert out.shape == (b, f * (f + 1)), out.shape
    assert jnp.allclose(out, ref, atol=1e-5, rtol=1e-5), "flat tiled-grid mismatch"

    # Outer-product path (F a multiple of 128): dense (.., F)-lane stores and the
    # in-kernel tail row via the clamped index_map + row mask.
    b, f = 24, 256
    x = jax.random.normal(k2, (b, f), dtype=jnp.float32)
    out = jax.block_until_ready(quadratic_feature_map(x))
    ref = _reference(x)
    assert out.shape == (b, f * (f + 1)), out.shape
    assert jnp.allclose(out, ref, atol=1e-5, rtol=1e-5), "outer-product path mismatch"

    print("KERNEL_OK")
</pallas_src>

<mosaic_0001>
module attributes {stable_mosaic.version = 11 : i64} {
  func.func @_flat_kernel(%arg0: i32, %arg1: i32, %arg2: memref<2x4xf32, #tpu.memory_space<vmem>>, %arg3: memref<2x20xf32, #tpu.memory_space<vmem>>) attributes {dimension_semantics = [#tpu.dimension_semantics<parallel>, #tpu.dimension_semantics<parallel>], iteration_bounds = array<i64: 1, 1>, scalar_prefetch = 0 : i64, scratch_operands = 0 : i64, tpu.core_type = #tpu.core_type<tc>, window_params = [{transform_indices = @transform_0, window_bounds = array<i64: 2, 4>}, {transform_indices = @transform_1, window_bounds = array<i64: 2, 20>}]} {
    %c0 = arith.constant 0 : index
    %c0_0 = arith.constant 0 : index
    %0 = vector.load %arg2[%c0, %c0_0] : memref<2x4xf32, #tpu.memory_space<vmem>>, vector<2x4xf32>
    %c20_i32 = arith.constant 20 : i32
    %1 = arith.muli %arg1, %c20_i32 : i32
    %2 = tpu.iota {dimensions = array<i32: 1>} : vector<4x20xi32>
    %3 = vector.broadcast %1 : i32 to vector<4x20xi32>
    %4 = arith.addi %3, %2 : vector<4x20xi32>
    %5 = tpu.iota {dimensions = array<i32: 0>} : vector<4x20xi32>
    %c4_i32 = arith.constant 4 : i32
    %6 = vector.broadcast %c4_i32 : i32 to vector<4x20xi32>
    %7 = arith.muli %5, %6 : vector<4x20xi32>
    %8 = arith.cmpi sge, %4, %7 : vector<4x20xi32>
    %c4_i32_1 = arith.constant 4 : i32
    %9 = vector.broadcast %c4_i32_1 : i32 to vector<4x20xi32>
    %10 = arith.addi %7, %9 : vector<4x20xi32>
    %11 = arith.cmpi slt, %4, %10 : vector<4x20xi32>
    %12 = arith.andi %8, %11 : vector<4x20xi1>
    %13 = arith.extui %12 : vector<4x20xi1> to vector<4x20xi32>
    %14 = arith.sitofp %13 : vector<4x20xi32> to vector<4x20xf32>
    %15 = arith.truncf %14 : vector<4x20xf32> to vector<4x20xbf16>
    %c4_i32_2 = arith.constant 4 : i32
    %16 = vector.broadcast %c4_i32_2 : i32 to vector<4x20xi32>
    %17 = arith.addi %7, %16 : vector<4x20xi32>
    %18 = arith.cmpi sge, %4, %17 : vector<4x20xi32>
    %19 = arith.extui %18 : vector<4x20xi1> to vector<4x20xi32>
    %cst = arith.constant dense<0> : vector<20xi32>
    %20 = vector.multi_reduction <add>, %19, %cst [0] : vector<4x20xi32> to vector<20xi32>
    %21 = vector.shape_cast %20 : vector<20xi32> to vector<1x20xi32>
    %c4_i32_3 = arith.constant 4 : i32
    %22 = vector.broadcast %c4_i32_3 : i32 to vector<1x20xi32>
    %23 = arith.muli %21, %22 : vector<1x20xi32>
    %24 = vector.broadcast %23 : vector<1x20xi32> to vector<4x20xi32>
    %25 = arith.subi %4, %24 : vector<4x20xi32>
    %26 = arith.cmpi eq, %5, %25 : vector<4x20xi32>
    %27 = arith.extui %26 : vector<4x20xi1> to vector<4x20xi32>
    %28 = arith.sitofp %27 : vector<4x20xi32> to vector<4x20xf32>
    %29 = arith.truncf %28 : vector<4x20xf32> to vector<4x20xbf16>
    %30 = arith.truncf %0 : vector<2x4xf32> to vector<2x4xbf16>
    %cst_4 = arith.constant dense<0.000000e+00> : vector<2x20xf32>
    %31 = tpu.matmul %30, %15, %cst_4 {dimension_numbers = #tpu.dot_dimension_numbers<[1], [0], [0], [1], [0, 0, 1, 1], [], []>} : vector<2x4xbf16>, vector<4x20xbf16>, vector<2x20xf32> -> vector<2x20xf32>
    %32 = arith.extf %30 : vector<2x4xbf16> to vector<2x4xf32>
    %33 = arith.subf %0, %32 : vector<2x4xf32>
    %34 = arith.truncf %33 : vector<2x4xf32> to vector<2x4xbf16>
    %cst_5 = arith.constant dense<0.000000e+00> : vector<2x20xf32>
    %35 = tpu.matmul %34, %15, %cst_5 {dimension_numbers = #tpu.dot_dimension_numbers<[1], [0], [0], [1], [0, 0, 1, 1], [], []>} : vector<2x4xbf16>, vector<4x20xbf16>, vector<2x20xf32> -> vector<2x20xf32>
    %36 = arith.addf %31, %35 : vector<2x20xf32>
    %37 = arith.extf %34 : vector<2x4xbf16> to vector<2x4xf32>
    %38 = arith.subf %33, %37 : vector<2x4xf32>
    %39 = arith.truncf %38 : vector<2x4xf32> to vector<2x4xbf16>
    %cst_6 = arith.constant dense<0.000000e+00> : vector<2x20xf32>
    %40 = tpu.matmul %39, %15, %cst_6 {dimension_numbers = #tpu.dot_dimension_numbers<[1], [0], [0], [1], [0, 0, 1, 1], [], []>} : vector<2x4xbf16>, vector<4x20xbf16>, vector<2x20xf32> -> vector<2x20xf32>
    %41 = arith.addf %36, %40 : vector<2x20xf32>
    %c4_i32_7 = arith.constant 4 : i32
    %42 = vector.broadcast %c4_i32_7 : i32 to vector<1x20xi32>
    %43 = arith.cmpi eq, %21, %42 : vector<1x20xi32>
    %44 = arith.extui %43 : vector<1x20xi1> to vector<1x20xi32>
    %45 = arith.sitofp %44 : vector<1x20xi32> to vector<1x20xf32>
    %46 = vector.broadcast %45 : vector<1x20xf32> to vector<2x20xf32>
    %47 = arith.addf %41, %46 : vector<2x20xf32>
    %48 = arith.truncf %0 : vector<2x4xf32> to vector<2x4xbf16>
    %cst_8 = arith.constant dense<0.000000e+00> : vector<2x20xf32>
    %49 = tpu.matmul %48, %29, %cst_8 {dimension_numbers = #tpu.dot_dimension_numbers<[1], [0], [0], [1], [0, 0, 1, 1], [], []>} : vector<2x4xbf16>, vector<4x20xbf16>, vector<2x20xf32> -> vector<2x20xf32>
    %50 = arith.extf %48 : vector<2x4xbf16> to vector<2x4xf32>
    %51 = arith.subf %0, %50 : vector<2x4xf32>
    %52 = arith.truncf %51 : vector<2x4xf32> to vector<2x4xbf16>
    %cst_9 = arith.constant dense<0.000000e+00> : vector<2x20xf32>
    %53 = tpu.matmul %52, %29, %cst_9 {dimension_numbers = #tpu.dot_dimension_numbers<[1], [0], [0], [1], [0, 0, 1, 1], [], []>} : vector<2x4xbf16>, vector<4x20xbf16>, vector<2x20xf32> -> vector<2x20xf32>
    %54 = arith.addf %49, %53 : vector<2x20xf32>
    %55 = arith.extf %52 : vector<2x4xbf16> to vector<2x4xf32>
    %56 = arith.subf %51, %55 : vector<2x4xf32>
    %57 = arith.truncf %56 : vector<2x4xf32> to vector<2x4xbf16>
    %cst_10 = arith.constant dense<0.000000e+00> : vector<2x20xf32>
    %58 = tpu.matmul %57, %29, %cst_10 {dimension_numbers = #tpu.dot_dimension_numbers<[1], [0], [0], [1], [0, 0, 1, 1], [], []>} : vector<2x4xbf16>, vector<4x20xbf16>, vector<2x20xf32> -> vector<2x20xf32>
    %59 = arith.addf %54, %58 : vector<2x20xf32>
    %60 = arith.mulf %47, %59 : vector<2x20xf32>
    %c0_11 = arith.constant 0 : index
    %c0_12 = arith.constant 0 : index
    %61 = vector.load %arg3[%c0_11, %c0_12] : memref<2x20xf32, #tpu.memory_space<vmem>>, vector<2x20xf32>
    tpu.vector_store %arg3[%c0_11, %c0_12], %60 {strides = array<i32>} : memref<2x20xf32, #tpu.memory_space<vmem>>, vector<2x20xf32>,
    return
  }
  func.func @transform_0(%arg0: i32, %arg1: i32) -> (i32, i32) {
    %c0_i32 = arith.constant 0 : i32
    %c0_i32_0 = arith.constant 0 : i32
    return %arg0, %c0_i32 : i32, i32
  }
  func.func @transform_1(%arg0: i32, %arg1: i32) -> (i32, i32) {
    %c0_i32 = arith.constant 0 : i32
    return %arg0, %arg1 : i32, i32
  }
}

</mosaic_0001>

<llo_original>
// kernel: tpu_custom_call.1
$region0: #{tpu_custom_call.1}
  #allocation0 [shape = 'u32[]', space=smem, size = 0x4, offset = 0x4, fixed_abs, tag = 'smem constant byte address 0x4 - core index']
  #allocation1 [shape = 'u32[144,128]{1,0:T(1,128)}', space=vmem, size = 0x12000, scoped, tag = 'internal scratch']
  %s0 = inlined_call_operand.hbm [shape: f32[2,4], index: 0, kind: input, shape index: {}]
  %s1 = inlined_call_operand.hbm [shape: f32[2,20], index: 1, kind: output, shape index: {}]
  %s2 = sld [smem:[#allocation0]]
  $region18: #{tpu_custom_call.1} parent=0
    _
  %s4 = ssub.s32 1, %s2
  %s5 = scalar_select 0, %s4, %s2
  $region1: #{tpu_custom_call.1} parent=0
    #allocation2 [shape = 'u8[1024]{0}', space=vmem, size = 0x400, scoped, tag = 'input window, operand 0, single buffered']
    #allocation3 [shape = 's32[1]{0}', space=sflag, size = 0x4, scoped, tag = 'scoped memory for tpu_custom_call.1']
    #allocation4 [shape = 's32[1]{0}', space=sflag, size = 0x4, scoped, tag = 'scoped memory for tpu_custom_call.1']
    #allocation5 [shape = 'u8[1024]{0}', space=vmem, size = 0x400, scoped, tag = 'output window, operand 0, single buffered']
    %6 = vsyncpa [#allocation3], 0
    %7 = vsyncpa [#allocation4], 0
    // Predicated region
    $region2: #{tpu_custom_call.1} parent=1 // pred_check
      _
    $region3: #{tpu_custom_call.1} parent=1 // pred_check_branch
      %9 = sbr.rel (0) target = $region5
    $region4: #{tpu_custom_call.1} parent=1 // pred_region
      %s11 = ssub.s32 32, 32
      %12 = vsyncadd [#allocation3], %s11
      %s14 = sshll.u32 [#allocation2], 4
      %s15 = int_to_ptr.vmem [resolvable:$true] %s14
      %17 = dma.hbm_to_vmem [thread:$0]  %s0, 32, %s15, [#allocation3]
    $region5: #{tpu_custom_call.1} parent=1 // pred_fallthru
      _
    // Predicated region
    $region6: #{tpu_custom_call.1} parent=1 // pred_check
      _
    $region7: #{tpu_custom_call.1} parent=1 // pred_check_branch
      %19 = sbr.rel (0) target = $region9
    $region8: #{tpu_custom_call.1} parent=1 // pred_region
      %20 = dma.done [#allocation3], 32
    $region9: #{tpu_custom_call.1} parent=1 // pred_fallthru
      _
    %v22 = vld [vmem:[#allocation2] sm:$0x3]
    %s23 = smul.u32 0, 20
    %v24 = vlaneseq
    %v25 = vand.u32 %v24, 127
    %v26 = vstv %s23
    %v27 = vadd.s32 %v26, %v25
    %v28 = vlaneseq
    %v29 = vshrl.u32 %v28, 7
    %v30 = vmul.u32 %v29, 4
    %vm31 = vcmp.ge.s32.totalorder %v27, %v30
    %v32 = vadd.s32 %v30, 4
    %vm33 = vcmp.lt.s32.totalorder %v27, %v32
    %vm34 = vmand %vm31, %vm33
    %v35 = vsel %vm34, 1, 0
    %v36 = vcvt.s32.f32 %v35
    %v37 = vpack.c.bf16 %v36, %v36
    %vm38 = vcmp.ge.s32.totalorder %v27, %v32
    %v39 = vsel %vm38, 1, 0
    %vm40 = vcmask 158720
    %v41 = vsel %vm40, %v39, 0
    %v42 = vrot.slane %v41, 4
    %v43 = vadd.s32 %v41, %v42
    %v44 = vrot.slane %v43, 2
    %v45 = vadd.s32 %v43, %v44
    %v46 = vrot.slane %v45, 1
    %v47 = vadd.s32 %v45, %v46
    %v48 = vmul.u32 %v47, 4
    %v49 = vsub.s32 %v27, %v48
    %vm50 = vcmp.eq.s32.totalorder %v29, %v49
    %v51 = vsel %vm50, 1, 0
    %v52 = vcvt.s32.f32 %v51
    %v53 = vpack.c.bf16 %v52, %v52
    %v54 = vpack.c.bf16 %v22, %v22
    %v55 = vunpack.c.l.bf16 %v54
    %v56 = vsub.f32 %v22, %v55
    %v57 = vpack.c.bf16 %v56, %v56
    %vm58 = vcmask 31744
    %v60 = vsel %vm58, %v57, 0
    %vm62 = vcmask 1041408
    %v64 = vsel %vm62, %v37, 0
    %66 = vmatprep.subr.bf16.mxu0 0
    %67 = vmatpush1.bf16.msra.mxu0 %v64
    %68 = vmatprep.subr.bf16.mxu0 0
    %69 = vmatpush1.bf16.msra.mxu0 0
    %70 = vmatprep.subr.bf16.mxu0 0
    %71 = vmatpush1.bf16.msra.mxu0 0
    %72 = vmatprep.subr.bf16.mxu0 0
    %73 = vmatpush1.bf16.msra.mxu0 0
    %74 = vmatprep.subr.bf16.mxu0 0
    %75 = vmatpush1.bf16.msra.mxu0 0
    %76 = vmatprep.subr.bf16.mxu0 0
    %77 = vmatpush1.bf16.msra.mxu0 0
    %78 = vmatprep.subr.bf16.mxu0 0
    %79 = vmatpush1.bf16.msra.mxu0 0
    %80 = vmatprep.subr.bf16.mxu0 0
    %81 = vmatpush1.bf16.msra.mxu0 0
    %82 = vmatprep.subr.bf16.mxu0 0
    %83 = vmatpush1.bf16.msra.mxu0 0
    %84 = vmatprep.subr.bf16.mxu0 0
    %85 = vmatpush1.bf16.msra.mxu0 0
    %86 = vmatprep.subr.bf16.mxu0 0
    %87 = vmatpush1.bf16.msra.mxu0 0
    %88 = vmatprep.subr.bf16.mxu0 0
    %89 = vmatpush1.bf16.msra.mxu0 0
    %90 = vmatprep.subr.bf16.mxu0 0
    %91 = vmatpush1.bf16.msra.mxu0 0
    %92 = vmatprep.subr.bf16.mxu0 0
    %93 = vmatpush1.bf16.msra.mxu0 0
    %94 = vmatprep.subr.bf16.mxu0 0
    %95 = vmatpush1.bf16.msra.mxu0 0
    %96 = vmatprep.subr.bf16.mxu0 0
    %97 = vmatpush1.bf16.msra.mxu0 0
    %98 = vmatprep.mubr.bf16.mxu0 0
    %99 = vmatmul.mubr.bf16.gmra.mrb[0].mxu0 %v60
    %v100 = vpop.f32.mrb[0].mxu0
    %v101 = vadd.f32 0.0, %v100
    %v102 = vpop.f32.mrb[0].mxu0
    %v103 = vpop.f32.mrb[0].mxu0
    %v104 = vpop.f32.mrb[0].mxu0
    %105 = vdwg.mxu0
    %v107 = vsel %vm58, %v54, 0
    %109 = vmatprep.subr.bf16.mxu0 0
    %110 = vmatpush1.bf16.msra.mxu0 %v64
    %111 = vmatprep.subr.bf16.mxu0 0
    %112 = vmatpush1.bf16.msra.mxu0 0
    %113 = vmatprep.subr.bf16.mxu0 0
    %114 = vmatpush1.bf16.msra.mxu0 0
    %115 = vmatprep.subr.bf16.mxu0 0
    %116 = vmatpush1.bf16.msra.mxu0 0
    %117 = vmatprep.subr.bf16.mxu0 0
    %118 = vmatpush1.bf16.msra.mxu0 0
    %119 = vmatprep.subr.bf16.mxu0 0
    %120 = vmatpush1.bf16.msra.mxu0 0
    %121 = vmatprep.subr.bf16.mxu0 0
    %122 = vmatpush1.bf16.msra.mxu0 0
    %123 = vmatprep.subr.bf16.mxu0 0
    %124 = vmatpush1.bf16.msra.mxu0 0
    %125 = vmatprep.subr.bf16.mxu0 0
    %126 = vmatpush1.bf16.msra.mxu0 0
    %127 = vmatprep.subr.bf16.mxu0 0
    %128 = vmatpush1.bf16.msra.mxu0 0
    %129 = vmatprep.subr.bf16.mxu0 0
    %130 = vmatpush1.bf16.msra.mxu0 0
    %131 = vmatprep.subr.bf16.mxu0 0
    %132 = vmatpush1.bf16.msra.mxu0 0
    %133 = vmatprep.subr.bf16.mxu0 0
    %134 = vmatpush1.bf16.msra.mxu0 0
    %135 = vmatprep.subr.bf16.mxu0 0
    %136 = vmatpush1.bf16.msra.mxu0 0
    %137 = vmatprep.subr.bf16.mxu0 0
    %138 = vmatpush1.bf16.msra.mxu0 0
    %139 = vmatprep.subr.bf16.mxu0 0
    %140 = vmatpush1.bf16.msra.mxu0 0
    %141 = vmatprep.mubr.bf16.mxu0 0
    %142 = vmatmul.mubr.bf16.gmra.mrb[0].mxu0 %v107
    %v143 = vpop.f32.mrb[0].mxu0
    %v144 = vadd.f32 %v101, %v143
    %v145 = vpop.f32.mrb[0].mxu0
    %v146 = vpop.f32.mrb[0].mxu0
    %v147 = vpop.f32.mrb[0].mxu0
    %148 = vdwg.mxu0
    %v149 = vunpack.c.l.bf16 %v57
    %v150 = vsub.f32 %v56, %v149
    %v151 = vpack.c.bf16 %v150, %v150
    %v153 = vsel %vm58, %v151, 0
    %155 = vmatprep.subr.bf16.mxu0 0
    %156 = vmatpush1.bf16.msra.mxu0 %v64
    %157 = vmatprep.subr.bf16.mxu0 0
    %158 = vmatpush1.bf16.msra.mxu0 0
    %159 = vmatprep.subr.bf16.mxu0 0
    %160 = vmatpush1.bf16.msra.mxu0 0
    %161 = vmatprep.subr.bf16.mxu0 0
    %162 = vmatpush1.bf16.msra.mxu0 0
    %163 = vmatprep.subr.bf16.mxu0 0
    %164 = vmatpush1.bf16.msra.mxu0 0
    %165 = vmatprep.subr.bf16.mxu0 0
    %166 = vmatpush1.bf16.msra.mxu0 0
    %167 = vmatprep.subr.bf16.mxu0 0
    %168 = vmatpush1.bf16.msra.mxu0 0
    %169 = vmatprep.subr.bf16.mxu0 0
    %170 = vmatpush1.bf16.msra.mxu0 0
    %171 = vmatprep.subr.bf16.mxu0 0
    %172 = vmatpush1.bf16.msra.mxu0 0
    %173 = vmatprep.subr.bf16.mxu0 0
    %174 = vmatpush1.bf16.msra.mxu0 0
    %175 = vmatprep.subr.bf16.mxu0 0
    %176 = vmatpush1.bf16.msra.mxu0 0
    %177 = vmatprep.subr.bf16.mxu0 0
    %178 = vmatpush1.bf16.msra.mxu0 0
    %179 = vmatprep.subr.bf16.mxu0 0
    %180 = vmatpush1.bf16.msra.mxu0 0
    %181 = vmatprep.subr.bf16.mxu0 0
    %182 = vmatpush1.bf16.msra.mxu0 0
    %183 = vmatprep.subr.bf16.mxu0 0
    %184 = vmatpush1.bf16.msra.mxu0 0
    %185 = vmatprep.subr.bf16.mxu0 0
    %186 = vmatpush1.bf16.msra.mxu0 0
    %187 = vmatprep.mubr.bf16.mxu0 0
    %188 = vmatmul.mubr.bf16.gmra.mrb[0].mxu0 %v153
    %v189 = vpop.f32.mrb[0].mxu0
    %v190 = vadd.f32 0.0, %v189
    %v191 = vpop.f32.mrb[0].mxu0
    %v192 = vpop.f32.mrb[0].mxu0
    %v193 = vpop.f32.mrb[0].mxu0
    %194 = vdwg.mxu0
    %v195 = vadd.f32 %v144, %v190
    %vm196 = vcmp.eq.s32.totalorder %v47, 4
    %v197 = vsel %vm196, 1, 0
    %v198 = vcvt.s32.f32 %v197
    %v199 = vadd.f32 %v195, %v198
    %v201 = vsel %vm62, %v53, 0
    %203 = vmatprep.subr.bf16.mxu0 0
    %204 = vmatpush1.bf16.msra.mxu0 %v201
    %205 = vmatprep.subr.bf16.mxu0 0
    %206 = vmatpush1.bf16.msra.mxu0 0
    %207 = vmatprep.subr.bf16.mxu0 0
    %208 = vmatpush1.bf16.msra.mxu0 0
    %209 = vmatprep.subr.bf16.mxu0 0
    %210 = vmatpush1.bf16.msra.mxu0 0
    %211 = vmatprep.subr.bf16.mxu0 0
    %212 = vmatpush1.bf16.msra.mxu0 0
    %213 = vmatprep.subr.bf16.mxu0 0
    %214 = vmatpush1.bf16.msra.mxu0 0
    %215 = vmatprep.subr.bf16.mxu0 0
    %216 = vmatpush1.bf16.msra.mxu0 0
    %217 = vmatprep.subr.bf16.mxu0 0
    %218 = vmatpush1.bf16.msra.mxu0 0
    %219 = vmatprep.subr.bf16.mxu0 0
    %220 = vmatpush1.bf16.msra.mxu0 0
    %221 = vmatprep.subr.bf16.mxu0 0
    %222 = vmatpush1.bf16.msra.mxu0 0
    %223 = vmatprep.subr.bf16.mxu0 0
    %224 = vmatpush1.bf16.msra.mxu0 0
    %225 = vmatprep.subr.bf16.mxu0 0
    %226 = vmatpush1.bf16.msra.mxu0 0
    %227 = vmatprep.subr.bf16.mxu0 0
    %228 = vmatpush1.bf16.msra.mxu0 0
    %229 = vmatprep.subr.bf16.mxu0 0
    %230 = vmatpush1.bf16.msra.mxu0 0
    %231 = vmatprep.subr.bf16.mxu0 0
    %232 = vmatpush1.bf16.msra.mxu0 0
    %233 = vmatprep.subr.bf16.mxu0 0
    %234 = vmatpush1.bf16.msra.mxu0 0
    %235 = vmatprep.mubr.bf16.mxu0 0
    %236 = vmatmul.mubr.bf16.gmra.mrb[0].mxu0 %v60
    %v237 = vpop.f32.mrb[0].mxu0
    %v238 = vadd.f32 0.0, %v237
    %v239 = vpop.f32.mrb[0].mxu0
    %v240 = vpop.f32.mrb[0].mxu0
    %v241 = vpop.f32.mrb[0].mxu0
    %242 = vdwg.mxu0
    %243 = vmatprep.subr.bf16.mxu0 0
    %244 = vmatpush1.bf16.msra.mxu0 %v201
    %245 = vmatprep.subr.bf16.mxu0 0
    %246 = vmatpush1.bf16.msra.mxu0 0
    %247 = vmatprep.subr.bf16.mxu0 0
    %248 = vmatpush1.bf16.msra.mxu0 0
    %249 = vmatprep.subr.bf16.mxu0 0
    %250 = vmatpush1.bf16.msra.mxu0 0
    %251 = vmatprep.subr.bf16.mxu0 0
    %252 = vmatpush1.bf16.msra.mxu0 0
    %253 = vmatprep.subr.bf16.mxu0 0
    %254 = vmatpush1.bf16.msra.mxu0 0
    %255 = vmatprep.subr.bf16.mxu0 0
    %256 = vmatpush1.bf16.msra.mxu0 0
    %257 = vmatprep.subr.bf16.mxu0 0
    %258 = vmatpush1.bf16.msra.mxu0 0
    %259 = vmatprep.subr.bf16.mxu0 0
    %260 = vmatpush1.bf16.msra.mxu0 0
    %261 = vmatprep.subr.bf16.mxu0 0
    %262 = vmatpush1.bf16.msra.mxu0 0
    %263 = vmatprep.subr.bf16.mxu0 0
    %264 = vmatpush1.bf16.msra.mxu0 0
    %265 = vmatprep.subr.bf16.mxu0 0
    %266 = vmatpush1.bf16.msra.mxu0 0
    %267 = vmatprep.subr.bf16.mxu0 0
    %268 = vmatpush1.bf16.msra.mxu0 0
    %269 = vmatprep.subr.bf16.mxu0 0
    %270 = vmatpush1.bf16.msra.mxu0 0
    %271 = vmatprep.subr.bf16.mxu0 0
    %272 = vmatpush1.bf16.msra.mxu0 0
    %273 = vmatprep.subr.bf16.mxu0 0
    %274 = vmatpush1.bf16.msra.mxu0 0
    %275 = vmatprep.mubr.bf16.mxu0 0
    %276 = vmatmul.mubr.bf16.gmra.mrb[0].mxu0 %v107
    %v277 = vpop.f32.mrb[0].mxu0
    %v278 = vadd.f32 %v238, %v277
    %v279 = vpop.f32.mrb[0].mxu0
    %v280 = vpop.f32.mrb[0].mxu0
    %v281 = vpop.f32.mrb[0].mxu0
    %282 = vdwg.mxu0
    %283 = vmatprep.subr.bf16.mxu0 0
    %284 = vmatpush1.bf16.msra.mxu0 %v201
    %285 = vmatprep.subr.bf16.mxu0 0
    %286 = vmatpush1.bf16.msra.mxu0 0
    %287 = vmatprep.subr.bf16.mxu0 0
    %288 = vmatpush1.bf16.msra.mxu0 0
    %289 = vmatprep.subr.bf16.mxu0 0
    %290 = vmatpush1.bf16.msra.mxu0 0
    %291 = vmatprep.subr.bf16.mxu0 0
    %292 = vmatpush1.bf16.msra.mxu0 0
    %293 = vmatprep.subr.bf16.mxu0 0
    %294 = vmatpush1.bf16.msra.mxu0 0
    %295 = vmatprep.subr.bf16.mxu0 0
    %296 = vmatpush1.bf16.msra.mxu0 0
    %297 = vmatprep.subr.bf16.mxu0 0
    %298 = vmatpush1.bf16.msra.mxu0 0
    %299 = vmatprep.subr.bf16.mxu0 0
    %300 = vmatpush1.bf16.msra.mxu0 0
    %301 = vmatprep.subr.bf16.mxu0 0
    %302 = vmatpush1.bf16.msra.mxu0 0
    %303 = vmatprep.subr.bf16.mxu0 0
    %304 = vmatpush1.bf16.msra.mxu0 0
    %305 = vmatprep.subr.bf16.mxu0 0
    %306 = vmatpush1.bf16.msra.mxu0 0
    %307 = vmatprep.subr.bf16.mxu0 0
    %308 = vmatpush1.bf16.msra.mxu0 0
    %309 = vmatprep.subr.bf16.mxu0 0
    %310 = vmatpush1.bf16.msra.mxu0 0
    %311 = vmatprep.subr.bf16.mxu0 0
    %312 = vmatpush1.bf16.msra.mxu0 0
    %313 = vmatprep.subr.bf16.mxu0 0
    %314 = vmatpush1.bf16.msra.mxu0 0
    %315 = vmatprep.mubr.bf16.mxu0 0
    %316 = vmatmul.mubr.bf16.gmra.mrb[0].mxu0 %v153
    %v317 = vpop.f32.mrb[0].mxu0
    %v318 = vadd.f32 0.0, %v317
    %v319 = vpop.f32.mrb[0].mxu0
    %v320 = vpop.f32.mrb[0].mxu0
    %v321 = vpop.f32.mrb[0].mxu0
    %322 = vdwg.mxu0
    %v323 = vadd.f32 %v278, %v318
    %v324 = vmul.f32 %v199, %v323
    %vm325 = vcmask 156672
    %326 = vst.msk [vmem:[#allocation5] sm:$0x3] %vm325, %v324
    // Predicated region
    $region10: #{tpu_custom_call.1} parent=1 // pred_check
      _
    $region11: #{tpu_custom_call.1} parent=1 // pred_check_branch
      %328 = sbr.rel (0) target = $region13
    $region12: #{tpu_custom_call.1} parent=1 // pred_region
      %s330 = ssub.s32 32, 32
      %331 = vsyncadd [#allocation4], %s330
      %s333 = sshll.u32 [#allocation5], 4
      %s334 = int_to_ptr.vmem [resolvable:$true] %s333
      %336 = dma.vmem_to_hbm [thread:$0]  %s334, 32, %s1, [#allocation4]
    $region13: #{tpu_custom_call.1} parent=1 // pred_fallthru
      _
    // Predicated region
    $region14: #{tpu_custom_call.1} parent=1 // pred_check
      _
    $region15: #{tpu_custom_call.1} parent=1 // pred_check_branch
      %338 = sbr.rel (0) target = $region17
    $region16: #{tpu_custom_call.1} parent=1 // pred_region
      %339 = dma.done [#allocation4], 32
    $region17: #{tpu_custom_call.1} parent=1 // pred_fallthru
      _
    %340 = vsyncpa [#allocation3], 1
    %341 = vsyncpa [#allocation4], 1

</llo_original>
